<compile_context>
chip_gen: v5e
topology: v5e:2x2
jax: 0.10.0
libtpu: 0.0.40
codegen_flags: <defaults>
</compile_context>

<pallas_src>
import functools

import jax
import jax.numpy as jnp
from jax import lax
from jax.experimental import pallas as pl
from jax.experimental.pallas import tpu as pltpu

_MASK_VALUE = -1e30


def _qkv_proj_kernel(x_ref, w_ref, b_ref, q_ref, k_ref, v_ref):
    # x_ref: (T, Ep); w_ref: (Ep, 3*Ep) = [wq*scale | wk | wv]; b_ref: (1, 3*Ep)
    # q_ref/k_ref/v_ref: (T, Ep)
    ep = q_ref.shape[-1]
    qkv = jnp.dot(x_ref[...], w_ref[...], preferred_element_type=jnp.float32)
    qkv = (qkv + b_ref[...]).astype(q_ref.dtype)
    # Lane-aligned slices (Ep is a multiple of 128).
    q_ref[...] = qkv[:, :ep]
    k_ref[...] = qkv[:, ep:2 * ep]
    v_ref[...] = qkv[:, 2 * ep:]


def _flash_attn_kernel(q_ref, k_ref, v_ref, o_ref, m_ref, l_ref, acc_ref,
                       *, kv_len, block_k, need_mask):
    # q_ref: (TQ, Ep), already scaled by 1/sqrt(E); k_ref/v_ref: (TK, Ep)
    ki = pl.program_id(2)

    @pl.when(ki == 0)
    def _():
        m_ref[...] = jnp.full(m_ref.shape, -jnp.inf, dtype=jnp.float32)
        l_ref[...] = jnp.zeros(l_ref.shape, dtype=jnp.float32)
        acc_ref[...] = jnp.zeros(acc_ref.shape, dtype=jnp.float32)

    q = q_ref[...]
    k = k_ref[...]
    v = v_ref[...]

    # scores = q @ k^T with the transpose folded into the MXU operand feed.
    s = lax.dot_general(q, k, dimension_numbers=(((1,), (1,)), ((), ())),
                        preferred_element_type=jnp.float32)      # (TQ, TK) f32

    if need_mask:  # static: only emitted when S was padded up to a tile multiple
        col = ki * block_k + lax.broadcasted_iota(jnp.int32, s.shape, 1)
        s = jnp.where(col < kv_len, s, _MASK_VALUE)

    # Online (flash) softmax update; all elementwise math stays in f32.
    m_prev = m_ref[...]
    m_new = jnp.maximum(m_prev, jnp.max(s, axis=-1, keepdims=True))
    alpha = jnp.exp(m_prev - m_new)
    p = jnp.exp(s - m_new)
    l_ref[...] = alpha * l_ref[...] + jnp.sum(p, axis=-1, keepdims=True)
    acc_ref[...] = alpha * acc_ref[...] + jnp.dot(
        p.astype(v.dtype), v, preferred_element_type=jnp.float32)
    m_ref[...] = m_new

    @pl.when(ki == pl.num_programs(2) - 1)
    def _():
        # Deferred normalization: EUP approximate reciprocal + one Newton step.
        l = l_ref[...]
        inv = pl.reciprocal(l, approx=True)
        inv = inv * (2.0 - l * inv)
        o_ref[...] = (acc_ref[...] * inv).astype(o_ref.dtype)


def _round_up(n, m):
    return ((n + m - 1) // m) * m


def _seq_tile(seq_len):
    # MXU-friendly tiles: one tile for short sequences (<= 512, minimal
    # padding), 256-row tiles (matching v6e/v7x 256-wide MXU) for longer ones.
    if seq_len <= 512:
        return _round_up(max(seq_len, 16), 16)
    return 256


def _vmem_limit_bytes():
    # Raise the scoped-VMEM ceiling above the 16/32 MiB defaults while leaving
    # headroom below physical capacity (v7x has only 64 MiB per TensorCore).
    phys = 64 * 1024 * 1024
    try:
        info = pltpu.get_tpu_info()
        phys = int(getattr(info, "vmem_capacity_bytes", phys) or phys)
    except Exception:
        pass
    return max(32 * 1024 * 1024,
               min(phys - 8 * 1024 * 1024, 100 * 1024 * 1024))


def self_attention(x, wq_t, bq, wk_t, bk, wv_t, bv):
    """x: (B, S, E); w*_t: (E, E) in (in, out) layout (== PyTorch W.T); b*: (E,)."""
    B, S, E = x.shape
    dt = x.dtype
    scale = 1.0 / (float(E) ** 0.5)   # uses the *original* embed_dim

    # Pad embed (lane) dim to a multiple of 128 and seq dim to a tile multiple.
    # Zero-padded features contribute 0 to every contraction (exact); padded
    # key positions are masked inside the attention kernel; padded query rows
    # and embed columns are cropped below.
    Ep = max(128, _round_up(E, 128))
    T = _seq_tile(S)
    Sp = _round_up(S, T)
    pe, ps = Ep - E, Sp - S

    x_p = jnp.pad(x, ((0, 0), (0, ps), (0, pe))) if (pe or ps) else x

    def pad_w(w):
        return jnp.pad(w, ((0, pe), (0, pe))) if pe else w

    def pad_b(b):
        return jnp.pad(b, (0, pe)) if pe else b

    # Fold the 1/sqrt(E) scale into the Q weights/bias and fuse Q/K/V weights
    # into a single (Ep, 3*Ep) matmul operand.
    w_qkv = jnp.concatenate(
        [pad_w(wq_t) * scale, pad_w(wk_t), pad_w(wv_t)], axis=1).astype(dt)
    b_qkv = jnp.concatenate(
        [pad_b(bq) * scale, pad_b(bk), pad_b(bv)], axis=0).reshape(1, 3 * Ep).astype(dt)

    vmem_limit = _vmem_limit_bytes()

    # ---- Kernel 1: fused QKV projection (one pass over the tokens). --------
    # TODO(synk): single-buffer the grid-invariant weight/bias specs
    # (pipeline_mode=pl.Buffered(1)) and optionally cast MXU operands to bf16
    # (f32 accumulate) once callers accept bf16 matmul precision.
    qkv_out_spec = pl.BlockSpec((pl.Squeezed(), T, Ep), lambda b, si: (b, si, 0))
    q, k, v = pl.pallas_call(
        _qkv_proj_kernel,
        out_shape=tuple(jax.ShapeDtypeStruct((B, Sp, Ep), dt) for _ in range(3)),
        grid_spec=pltpu.PrefetchScalarGridSpec(
            num_scalar_prefetch=0,
            grid=(B, Sp // T),
            in_specs=[
                pl.BlockSpec((pl.Squeezed(), T, Ep), lambda b, si: (b, si, 0)),
                pl.BlockSpec((Ep, 3 * Ep), lambda b, si: (0, 0)),
                pl.BlockSpec((1, 3 * Ep), lambda b, si: (0, 0)),
            ],
            out_specs=[qkv_out_spec, qkv_out_spec, qkv_out_spec],
        ),
        compiler_params=pltpu.CompilerParams(
            dimension_semantics=("parallel", "parallel"),
            vmem_limit_bytes=vmem_limit,
        ),
    )(x_p, w_qkv, b_qkv)

    # ---- Kernel 2: flash-style attention over (B, q-tiles, kv-tiles). ------
    kernel = functools.partial(_flash_attn_kernel, kv_len=S, block_k=T,
                               need_mask=(Sp != S))
    out_p = pl.pallas_call(
        kernel,
        out_shape=jax.ShapeDtypeStruct((B, Sp, Ep), dt),
        grid_spec=pltpu.PrefetchScalarGridSpec(
            num_scalar_prefetch=0,
            grid=(B, Sp // T, Sp // T),
            in_specs=[
                pl.BlockSpec((pl.Squeezed(), T, Ep), lambda b, qi, ki: (b, qi, 0)),
                pl.BlockSpec((pl.Squeezed(), T, Ep), lambda b, qi, ki: (b, ki, 0)),
                pl.BlockSpec((pl.Squeezed(), T, Ep), lambda b, qi, ki: (b, ki, 0)),
            ],
            out_specs=pl.BlockSpec((pl.Squeezed(), T, Ep),
                                   lambda b, qi, ki: (b, qi, 0)),
            scratch_shapes=[
                pltpu.VMEM((T, 1), jnp.float32),    # running max   m
                pltpu.VMEM((T, 1), jnp.float32),    # running sum   l
                pltpu.VMEM((T, Ep), jnp.float32),   # unnormalized accumulator
            ],
        ),
        compiler_params=pltpu.CompilerParams(
            dimension_semantics=("parallel", "parallel", "arbitrary"),
            vmem_limit_bytes=vmem_limit,
        ),
    )(q, k, v)

    return out_p[:, :S, :E] if (pe or ps) else out_p


def _reference(x, wq_t, bq, wk_t, bk, wv_t, bv):
    q = x @ wq_t + bq
    k = x @ wk_t + bk
    v = x @ wv_t + bv
    scores = jnp.einsum("bqe,bke->bqk", q, k) / (x.shape[-1] ** 0.5)
    attn = jax.nn.softmax(scores, axis=-1)
    return jnp.einsum("bqk,bke->bqe", attn, v)


if __name__ == "__main__":
    B, S, E = 2, 8, 32
    key = jax.random.PRNGKey(0)
    kx, kq, kbq, kk, kbk, kv_key, kbv = jax.random.split(key, 7)

    x = jax.random.normal(kx, (B, S, E), dtype=jnp.float32)

    # Deterministic parameter init (mimics nn.Linear uniform(-1/sqrt(E), 1/sqrt(E)))
    bound = 1.0 / (E ** 0.5)
    init = lambda kk_, shape: jax.random.uniform(kk_, shape, jnp.float32, -bound, bound)
    # Stored directly in (in, out) layout == W.T of the PyTorch (out, in) weight.
    wq_t = init(kq, (E, E)); bq = init(kbq, (E,))
    wk_t = init(kk, (E, E)); bk = init(kbk, (E,))
    wv_t = init(kv_key, (E, E)); bv = init(kbv, (E,))

    out = self_attention(x, wq_t, bq, wk_t, bk, wv_t, bv)
    out = jax.block_until_ready(out)

    ref = _reference(x, wq_t, bq, wk_t, bk, wv_t, bv)
    assert out.shape == (B, S, E)
    assert jnp.allclose(out, ref, atol=2e-4, rtol=2e-4), "mismatch vs reference"

    print("KERNEL_OK")
</pallas_src>

<mosaic_0001>
module attributes {stable_mosaic.version = 11 : i64} {
  func.func @_qkv_proj_kernel(%arg0: i32, %arg1: i32, %arg2: memref<1x16x128xf32, #tpu.memory_space<vmem>>, %arg3: memref<128x384xf32, #tpu.memory_space<vmem>>, %arg4: memref<1x384xf32, #tpu.memory_space<vmem>>, %arg5: memref<1x16x128xf32, #tpu.memory_space<vmem>>, %arg6: memref<1x16x128xf32, #tpu.memory_space<vmem>>, %arg7: memref<1x16x128xf32, #tpu.memory_space<vmem>>) attributes {dimension_semantics = [#tpu.dimension_semantics<parallel>, #tpu.dimension_semantics<parallel>], iteration_bounds = array<i64: 2, 1>, scalar_prefetch = 0 : i64, scratch_operands = 0 : i64, tpu.core_type = #tpu.core_type<tc>, window_params = [{transform_indices = @transform_0, window_bounds = array<i64: 1, 16, 128>}, {pipeline_mode = #tpu.pipeline_mode<synchronous>, transform_indices = @transform_1, window_bounds = array<i64: 128, 384>}, {pipeline_mode = #tpu.pipeline_mode<synchronous>, transform_indices = @transform_2, window_bounds = array<i64: 1, 384>}, {transform_indices = @transform_3, window_bounds = array<i64: 1, 16, 128>}, {transform_indices = @transform_4, window_bounds = array<i64: 1, 16, 128>}, {transform_indices = @transform_5, window_bounds = array<i64: 1, 16, 128>}]} {
    %c0 = arith.constant 0 : index
    %c0_0 = arith.constant 0 : index
    %c0_1 = arith.constant 0 : index
    %0 = vector.load %arg2[%c0, %c0_0, %c0_1] : memref<1x16x128xf32, #tpu.memory_space<vmem>>, vector<1x16x128xf32>
    %1 = vector.shape_cast %0 : vector<1x16x128xf32> to vector<16x128xf32>
    %c0_2 = arith.constant 0 : index
    %c0_3 = arith.constant 0 : index
    %2 = vector.load %arg3[%c0_2, %c0_3] : memref<128x384xf32, #tpu.memory_space<vmem>>, vector<128x384xf32>
    %cst = arith.constant dense<0.000000e+00> : vector<16x384xf32>
    %3 = tpu.matmul %1, %2, %cst {dimension_numbers = #tpu.dot_dimension_numbers<[1], [0], [0], [1], [0, 0, 1, 1], [], []>} : vector<16x128xf32>, vector<128x384xf32>, vector<16x384xf32> -> vector<16x384xf32>
    %c0_4 = arith.constant 0 : index
    %c0_5 = arith.constant 0 : index
    %4 = vector.load %arg4[%c0_4, %c0_5] : memref<1x384xf32, #tpu.memory_space<vmem>>, vector<1x384xf32>
    %5 = vector.broadcast %4 : vector<1x384xf32> to vector<16x384xf32>
    %6 = arith.addf %3, %5 : vector<16x384xf32>
    %7 = vector.extract_strided_slice %6 {offsets = [0, 0], sizes = [16, 128], strides = [1, 1]} : vector<16x384xf32> to vector<16x128xf32>
    %c0_6 = arith.constant 0 : index
    %c0_7 = arith.constant 0 : index
    %c0_8 = arith.constant 0 : index
    %8 = vector.load %arg5[%c0_6, %c0_7, %c0_8] : memref<1x16x128xf32, #tpu.memory_space<vmem>>, vector<1x16x128xf32>
    %9 = vector.shape_cast %8 : vector<1x16x128xf32> to vector<16x128xf32>
    %10 = vector.shape_cast %7 : vector<16x128xf32> to vector<1x16x128xf32>
    tpu.vector_store %arg5[%c0_6, %c0_7, %c0_8], %10 {strides = array<i32>} : memref<1x16x128xf32, #tpu.memory_space<vmem>>, vector<1x16x128xf32>,
    %11 = vector.extract_strided_slice %6 {offsets = [0, 128], sizes = [16, 128], strides = [1, 1]} : vector<16x384xf32> to vector<16x128xf32>
    %c0_9 = arith.constant 0 : index
    %c0_10 = arith.constant 0 : index
    %c0_11 = arith.constant 0 : index
    %12 = vector.load %arg6[%c0_9, %c0_10, %c0_11] : memref<1x16x128xf32, #tpu.memory_space<vmem>>, vector<1x16x128xf32>
    %13 = vector.shape_cast %12 : vector<1x16x128xf32> to vector<16x128xf32>
    %14 = vector.shape_cast %11 : vector<16x128xf32> to vector<1x16x128xf32>
    tpu.vector_store %arg6[%c0_9, %c0_10, %c0_11], %14 {strides = array<i32>} : memref<1x16x128xf32, #tpu.memory_space<vmem>>, vector<1x16x128xf32>,
    %15 = vector.extract_strided_slice %6 {offsets = [0, 256], sizes = [16, 128], strides = [1, 1]} : vector<16x384xf32> to vector<16x128xf32>
    %c0_12 = arith.constant 0 : index
    %c0_13 = arith.constant 0 : index
    %c0_14 = arith.constant 0 : index
    %16 = vector.load %arg7[%c0_12, %c0_13, %c0_14] : memref<1x16x128xf32, #tpu.memory_space<vmem>>, vector<1x16x128xf32>
    %17 = vector.shape_cast %16 : vector<1x16x128xf32> to vector<16x128xf32>
    %18 = vector.shape_cast %15 : vector<16x128xf32> to vector<1x16x128xf32>
    tpu.vector_store %arg7[%c0_12, %c0_13, %c0_14], %18 {strides = array<i32>} : memref<1x16x128xf32, #tpu.memory_space<vmem>>, vector<1x16x128xf32>,
    return
  }
  func.func @transform_0(%arg0: i32, %arg1: i32) -> (i32, i32, i32) {
    %c0_i32 = arith.constant 0 : i32
    %c0_i32_0 = arith.constant 0 : i32
    return %arg0, %arg1, %c0_i32 : i32, i32, i32
  }
  func.func @transform_1(%arg0: i32, %arg1: i32) -> (i32, i32) {
    %c0_i32 = arith.constant 0 : i32
    %c0_i32_0 = arith.constant 0 : i32
    %c0_i32_1 = arith.constant 0 : i32
    return %c0_i32, %c0_i32_0 : i32, i32
  }
  func.func @transform_2(%arg0: i32, %arg1: i32) -> (i32, i32) {
    %c0_i32 = arith.constant 0 : i32
    %c0_i32_0 = arith.constant 0 : i32
    %c0_i32_1 = arith.constant 0 : i32
    return %c0_i32, %c0_i32_0 : i32, i32
  }
  func.func @transform_3(%arg0: i32, %arg1: i32) -> (i32, i32, i32) {
    %c0_i32 = arith.constant 0 : i32
    %c0_i32_0 = arith.constant 0 : i32
    return %arg0, %arg1, %c0_i32 : i32, i32, i32
  }
  func.func @transform_4(%arg0: i32, %arg1: i32) -> (i32, i32, i32) {
    %c0_i32 = arith.constant 0 : i32
    %c0_i32_0 = arith.constant 0 : i32
    return %arg0, %arg1, %c0_i32 : i32, i32, i32
  }
  func.func @transform_5(%arg0: i32, %arg1: i32) -> (i32, i32, i32) {
    %c0_i32 = arith.constant 0 : i32
    %c0_i32_0 = arith.constant 0 : i32
    return %arg0, %arg1, %c0_i32 : i32, i32, i32
  }
}

</mosaic_0001>

<llo_original>
// kernel: tpu_custom_call.1
$region0: #{tpu_custom_call.1}
  #allocation0 [shape = 'u32[]', space=smem, size = 0x4, offset = 0x4, fixed_abs, tag = 'smem constant byte address 0x4 - core index']
  #allocation1 [shape = 'u32[72,128]{1,0:T(1,128)}', space=vmem, size = 0x9000, scoped, tag = 'internal scratch']
  %s0 = inlined_call_operand.hbm [shape: f32[2,16,128], index: 0, kind: input, shape index: {}]
  %s1 = inlined_call_operand.hbm [shape: f32[128,384], index: 1, kind: input, shape index: {}]
  %s2 = inlined_call_operand.hbm [shape: f32[1,384], index: 2, kind: input, shape index: {}]
  %s3 = inlined_call_operand.hbm [shape: f32[2,16,128], index: 3, kind: output, shape index: {0}]
  %s4 = inlined_call_operand.hbm [shape: f32[2,16,128], index: 4, kind: output, shape index: {1}]
  %s5 = inlined_call_operand.hbm [shape: f32[2,16,128], index: 5, kind: output, shape index: {2}]
  %6 = xla_tuple %s3, %s4, %s5
  %s7 = sld [smem:[#allocation0]]
  $region73: #{tpu_custom_call.1} parent=0
    _
  %s9 = ssub.s32 1, %s7
  %s10 = scalar_select 0, %s9, %s7
  $region1: #{tpu_custom_call.1} parent=0
    #allocation2 [shape = 'u8[16384]{0}', space=vmem, size = 0x4000, scoped, tag = 'input window, operand 0']
    #allocation3 [shape = 's32[2]{0}', space=sflag, size = 0x8, scoped, tag = 'scoped memory for tpu_custom_call.1']
    #allocation4 [shape = 's32[2]{0}', space=sflag, size = 0x8, scoped, tag = 'scoped memory for tpu_custom_call.1']
    #allocation5 [shape = 'u8[196608]{0}', space=vmem, size = 0x30000, scoped, tag = 'input window, operand 1, single buffered']
    #allocation6 [shape = 's32[1]{0}', space=sflag, size = 0x4, scoped, tag = 'scoped memory for tpu_custom_call.1']
    #allocation7 [shape = 'u8[1536]{0}', space=vmem, size = 0x800, scoped, tag = 'input window, operand 2, single buffered']
    #allocation8 [shape = 'u8[16384]{0}', space=vmem, size = 0x4000, scoped, tag = 'output window, operand 0']
    #allocation9 [shape = 'u8[16384]{0}', space=vmem, size = 0x4000, scoped, tag = 'output window, operand 1']
    #allocation10 [shape = 's32[2]{0}', space=sflag, size = 0x8, scoped, tag = 'scoped memory for tpu_custom_call.1']
    #allocation11 [shape = 'u8[16384]{0}', space=vmem, size = 0x4000, scoped, tag = 'output window, operand 2']
    %11 = vsyncpa [#allocation3], 0
    %s12 = scalar_lea.sflag [#allocation3], 1
    %13 = vsyncpa %s12, 0
    %14 = vsyncpa [#allocation6], 0
    %15 = vsyncpa [#allocation4], 0
    %s16 = scalar_lea.sflag [#allocation4], 1
    %17 = vsyncpa %s16, 0
    %18 = vsyncpa [#allocation10], 0
    %s19 = scalar_lea.sflag [#allocation10], 1
    %20 = vsyncpa %s19, 0
    loop: start=0, step=1, limit=4
    $region2: #{tpu_custom_call.1} parent=1 // loop_pre_header
      _
    $region3: #{tpu_custom_call.1} parent=1 // loop_header
      %s22 = sphi 0, %s26
      %p23 = scmp.ge.s32.totalorder %s22, 4
      %s29 = sphi 0, %s41
      %s30 = sphi 0, %s37
      %s31 = sphi 0, %s29
      %s32 = sphi 0, %s30
      %s33 = sphi 0, %s31
      %s34 = sphi 0, %s32
      %s46 = sphi 0, %s48
      %s49 = sphi 0, %s46
      %s50 = sphi 0, %s49
      %s66 = sphi 0, %s50
      %s70 = sphi 0, %s70
      %s72 = sphi 0, %s70
      %s73 = sphi 0, %s72
      %s87 = sphi 0, %s73
      %s91 = sphi 0, %s91
      %s93 = sphi 0, %s91
      %s94 = sphi 0, %s93
      %s108 = sphi 0, %s94
      %s116 = sphi 0, %s118
      %s119 = sphi 0, %s116
      %s120 = sphi 0, %s119
      %s136 = sphi 0, %s120
      %s144 = sphi 0, %s146
      %s147 = sphi 0, %s144
      %s148 = sphi 0, %s147
      %s164 = sphi 0, %s148
      %s172 = sphi 0, %s174
      %s175 = sphi 0, %s172
      %s176 = sphi 0, %s175
      %s192 = sphi 0, %s176
    $region4: #{tpu_custom_call.1} parent=1 // loop_header_branch
      %25 = sbr.rel (%p23) target = $region8
    $region5: #{tpu_custom_call.1} parent=1 // loop_body
      %s27 = ssub.s32 %s22, 1
      %s28 = ssub.s32 %s22, 2
      %s35 = sadd.s32 1, %s30
      %p36 = scmp.ge.s32.totalorder %s35, 1
      %s37 = scalar_select %p36, 0, %s35
      %s38 = sadd.s32 1, %s29
      %s39 = scalar_select %p36, %s38, %s29
      %p40 = scmp.ge.s32.totalorder %s39, 2
      %s41 = scalar_select %p40, 0, %s39
      %s42 = ssub.s32 %s29, %s41
      %s43 = ssub.s32 %s30, %s37
      %s44 = sor.u32 %s42, %s43
      %p45 = scmp.eq.s32.totalorder %s44, 0
      %s47 = sadd.s32 %s46, 1
      %s48 = scalar_select %p45, %s46, %s47
      %p51 = pneg %p45
      %p52 = scmp.eq.s32.totalorder %s22, 1
      %p53 = por %p51, %p52
      %p54 = scmp.ne.s32.totalorder %s46, %s49
      %p55 = scmp.eq.s32.totalorder %s22, 0
      %p56 = por %p54, %p55
      %p57 = scmp.ne.s32.totalorder %s46, %s49
      %p58 = scmp.eq.s32.totalorder %s27, 1
      %p59 = por %p57, %p58
      %p60 = scmp.ne.s32.totalorder %s49, %s50
      %p61 = scmp.eq.s32.totalorder %s27, 0
      %p62 = por %p60, %p61
      %p63 = scmp.ne.s32.totalorder %s49, %s50
      %p64 = scmp.eq.s32.totalorder %s28, 1
      %p65 = por %p63, %p64
      %p67 = scmp.ne.s32.totalorder %s50, %s66
      %p68 = scmp.eq.s32.totalorder %s28, 0
      %p69 = por %p67, %p68
      %s71 = sadd.s32 %s70, 1
      %p74 = scmp.eq.s32.totalorder %s22, 1
      %p75 = scmp.ne.s32.totalorder %s70, %s72
      %p76 = scmp.eq.s32.totalorder %s22, 0
      %p77 = por %p75, %p76
      %p78 = scmp.ne.s32.totalorder %s70, %s72
      %p79 = scmp.eq.s32.totalorder %s27, 1
      %p80 = por %p78, %p79
      %p81 = scmp.ne.s32.totalorder %s72, %s73
      %p82 = scmp.eq.s32.totalorder %s27, 0
      %p83 = por %p81, %p82
      %p84 = scmp.ne.s32.totalorder %s72, %s73
      %p85 = scmp.eq.s32.totalorder %s28, 1
      %p86 = por %p84, %p85
      %p88 = scmp.ne.s32.totalorder %s73, %s87
      %p89 = scmp.eq.s32.totalorder %s28, 0
      %p90 = por %p88, %p89
      %s92 = sadd.s32 %s91, 1
      %p95 = scmp.eq.s32.totalorder %s22, 1
      %p96 = scmp.ne.s32.totalorder %s91, %s93
      %p97 = scmp.eq.s32.totalorder %s22, 0
      %p98 = por %p96, %p97
      %p99 = scmp.ne.s32.totalorder %s91, %s93
      %p100 = scmp.eq.s32.totalorder %s27, 1
      %p101 = por %p99, %p100
      %p102 = scmp.ne.s32.totalorder %s93, %s94
      %p103 = scmp.eq.s32.totalorder %s27, 0
      %p104 = por %p102, %p103
      %p105 = scmp.ne.s32.totalorder %s93, %s94
      %p106 = scmp.eq.s32.totalorder %s28, 1
      %p107 = por %p105, %p106
      %p109 = scmp.ne.s32.totalorder %s94, %s108
      %p110 = scmp.eq.s32.totalorder %s28, 0
      %p111 = por %p109, %p110
      %s112 = ssub.s32 %s29, %s41
      %s113 = ssub.s32 %s30, %s37
      %s114 = sor.u32 %s112, %s113
      %p115 = scmp.eq.s32.totalorder %s114, 0
      %s117 = sadd.s32 %s116, 1
      %s118 = scalar_select %p115, %s116, %s117
      %p121 = pneg %p115
      %p122 = scmp.eq.s32.totalorder %s22, 1
      %p123 = por %p121, %p122
      %p124 = scmp.ne.s32.totalorder %s116, %s119
      %p125 = scmp.eq.s32.totalorder %s22, 0
      %p126 = por %p124, %p125
      %p127 = scmp.ne.s32.totalorder %s116, %s119
      %p128 = scmp.eq.s32.totalorder %s27, 1
      %p129 = por %p127, %p128
      %p130 = scmp.ne.s32.totalorder %s119, %s120
      %p131 = scmp.eq.s32.totalorder %s27, 0
      %p132 = por %p130, %p131
      %p133 = scmp.ne.s32.totalorder %s119, %s120
      %p134 = scmp.eq.s32.totalorder %s28, 1
      %p135 = por %p133, %p134
      %p137 = scmp.ne.s32.totalorder %s120, %s136
      %p138 = scmp.eq.s32.totalorder %s28, 0
      %p139 = por %p137, %p138
      %s140 = ssub.s32 %s29, %s41
      %s141 = ssub.s32 %s30, %s37
      %s142 = sor.u32 %s140, %s141
      %p143 = scmp.eq.s32.totalorder %s142, 0
      %s145 = sadd.s32 %s144, 1
      %s146 = scalar_select %p143, %s144, %s145
      %p149 = pneg %p143
      %p150 = scmp.eq.s32.totalorder %s22, 1
      %p151 = por %p149, %p150
      %p152 = scmp.ne.s32.totalorder %s144, %s147
      %p153 = scmp.eq.s32.totalorder %s22, 0
      %p154 = por %p152, %p153
      %p155 = scmp.ne.s32.totalorder %s144, %s147
      %p156 = scmp.eq.s32.totalorder %s27, 1
      %p157 = por %p155, %p156
      %p158 = scmp.ne.s32.totalorder %s147, %s148
      %p159 = scmp.eq.s32.totalorder %s27, 0
      %p160 = por %p158, %p159
      %p161 = scmp.ne.s32.totalorder %s147, %s148
      %p162 = scmp.eq.s32.totalorder %s28, 1
      %p163 = por %p161, %p162
      %p165 = scmp.ne.s32.totalorder %s148, %s164
      %p166 = scmp.eq.s32.totalorder %s28, 0
      %p167 = por %p165, %p166
      %s168 = ssub.s32 %s29, %s41
      %s169 = ssub.s32 %s30, %s37
      %s170 = sor.u32 %s168, %s169
      %p171 = scmp.eq.s32.totalorder %s170, 0
      %s173 = sadd.s32 %s172, 1
      %s174 = scalar_select %p171, %s172, %s173
      %p177 = pneg %p171
      %p178 = scmp.eq.s32.totalorder %s22, 1
      %p179 = por %p177, %p178
      %p180 = scmp.ne.s32.totalorder %s172, %s175
      %p181 = scmp.eq.s32.totalorder %s22, 0
      %p182 = por %p180, %p181
      %p183 = scmp.ne.s32.totalorder %s172, %s175
      %p184 = scmp.eq.s32.totalorder %s27, 1
      %p185 = por %p183, %p184
      %p186 = scmp.ne.s32.totalorder %s175, %s176
      %p187 = scmp.eq.s32.totalorder %s27, 0
      %p188 = por %p186, %p187
      %p189 = scmp.ne.s32.totalorder %s175, %s176
      %p190 = scmp.eq.s32.totalorder %s28, 1
      %p191 = por %p189, %p190
      %p193 = scmp.ne.s32.totalorder %s176, %s192
      %p194 = scmp.eq.s32.totalorder %s28, 0
      %p195 = por %p193, %p194
      %p196 = scmp.le.s32.totalorder 1, %s22
      %p197 = scmp.lt.s32.totalorder %s22, 3
      %p198 = pnand %p196, %p197
      %p199 = pneg %p198
      // Predicated region
      $region9: #{tpu_custom_call.1} parent=5 // pred_check
        _
      $region10: #{tpu_custom_call.1} parent=5 // pred_check_branch
        %201 = sbr.rel (%p198) target = $region12
      $region11: #{tpu_custom_call.1} parent=5 // pred_region
        %s202 = ssub.s32 %s22, 1
        // Predicated region
        $region13: #{tpu_custom_call.1} parent=11 // pred_check
          %p203 = pneg %p83
        $region14: #{tpu_custom_call.1} parent=11 // pred_check_branch
          %205 = sbr.rel (%p203) target = $region16
        $region15: #{tpu_custom_call.1} parent=11 // pred_region
          %207 = vsyncadd [#allocation6], 0
          %s208 = sshll.u32 %s1, 4
          %s209 = int_to_ptr.hbm [resolvable:$true] %s208
          %s210 = sshll.u32 [#allocation5], 4
          %s211 = int_to_ptr.vmem [resolvable:$true] %s210
          %216 = dma.hbm_to_vmem [thread:$0]  %s209, 6144, %s211, [#allocation6], 384, 384, 24
        $region16: #{tpu_custom_call.1} parent=11 // pred_fallthru
          _
        // Predicated region
        $region17: #{tpu_custom_call.1} parent=11 // pred_check
          %p217 = pneg %p104
        $region18: #{tpu_custom_call.1} parent=11 // pred_check_branch
          %219 = sbr.rel (%p217) target = $region20
        $region19: #{tpu_custom_call.1} parent=11 // pred_region
          %221 = vsyncadd [#allocation6], 0
          %s223 = sshll.u32 %s2, 4
          %s224 = int_to_ptr.hbm [resolvable:$true] %s223
          %s225 = sshll.u32 [#allocation7], 4
          %s226 = int_to_ptr.vmem [resolvable:$true] %s225
          %228 = dma.hbm_to_vmem [thread:$0]  %s224, 48, %s226, [#allocation6]
        $region20: #{tpu_custom_call.1} parent=11 // pred_fallthru
          _
      $region12: #{tpu_custom_call.1} parent=5 // pred_fallthru
        _
      %p229 = scmp.lt.s32.totalorder %s22, 2
      // Predicated region
      $region21: #{tpu_custom_call.1} parent=5 // pred_check
        %p230 = pneg %p229
      $region22: #{tpu_custom_call.1} parent=5 // pred_check_branch
        %232 = sbr.rel (%p230) target = $region24
      $region23: #{tpu_custom_call.1} parent=5 // pred_region
        // Predicated region
        $region25: #{tpu_custom_call.1} parent=23 // pred_check
          %p233 = pneg %p56
        $region26: #{tpu_custom_call.1} parent=23 // pred_check_branch
          %235 = sbr.rel (%p233) target = $region28
        $region27: #{tpu_custom_call.1} parent=23 // pred_region
          %s236 = sand.u32 %s46, 1
          %s237 = scalar_lea.sflag [#allocation3], %s236
          %s238 = sand.u32 %s46, 1
          %s239 = smul.addr %s238, 16
          %s240 = scalar_lea.vmem [#allocation2], %s239
          %s241 = smul.u32 2, %s30
          %243 = vsyncadd %s237, 0
          %s244 = smul.addr %s29, 2
          %s245 = sadd.s32 %s241, %s244
          %s246 = smul.addr %s245, 8
          %s247 = scalar_lea.hbm %s0, %s246
          %s248 = sshll.u32 %s247, 4
          %s249 = int_to_ptr.hbm [resolvable:$true] %s248
          %s250 = sshll.u32 %s240, 4
          %s251 = int_to_ptr.vmem [resolvable:$true] %s250
          %256 = dma.hbm_to_vmem [thread:$0]  %s249, 256, %s251, %s237, 128, 128, 8
        $region28: #{tpu_custom_call.1} parent=23 // pred_fallthru
          _
      $region24: #{tpu_custom_call.1} parent=5 // pred_fallthru
        _
      %p257 = scmp.le.s32.totalorder 1, %s22
      %p258 = scmp.lt.s32.totalorder %s22, 3
      %p259 = pnand %p257, %p258
      %p260 = pneg %p259
      // Predicated region
      $region29: #{tpu_custom_call.1} parent=5 // pred_check
        _
      $region30: #{tpu_custom_call.1} parent=5 // pred_check_branch
        %262 = sbr.rel (%p259) target = $region32
      $region31: #{tpu_custom_call.1} parent=5 // pred_region
        %s263 = ssub.s32 %s22, 1
        %s264 = sand.u32 %s49, 1
        %s265 = scalar_lea.sflag [#allocation3], %s264
        %s266 = sand.u32 %s49, 1
        %s267 = smul.addr %s266, 16
        %s268 = scalar_lea.vmem [#allocation2], %s267
        // Predicated region
        $region33: #{tpu_custom_call.1} parent=31 // pred_check
          %p269 = pneg %p62
        $region34: #{tpu_custom_call.1} parent=31 // pred_check_branch
          %271 = sbr.rel (%p269) target = $region36
        $region35: #{tpu_custom_call.1} parent=31 // pred_region
          %273 = dma.done %s265, 256
        $region36: #{tpu_custom_call.1} parent=31 // pred_fallthru
          _
        // Predicated region
        $region37: #{tpu_custom_call.1} parent=31 // pred_check
          %p274 = pneg %p83
        $region38: #{tpu_custom_call.1} parent=31 // pred_check_branch
          %276 = sbr.rel (%p274) target = $region40
        $region39: #{tpu_custom_call.1} parent=31 // pred_region
          %278 = dma.done [#allocation6], 6144
        $region40: #{tpu_custom_call.1} parent=31 // pred_fallthru
          _
        // Predicated region
        $region41: #{tpu_custom_call.1} parent=31 // pred_check
          %p279 = pneg %p104
        $region42: #{tpu_custom_call.1} parent=31 // pred_check_branch
          %281 = sbr.rel (%p279) target = $region44
        $region43: #{tpu_custom_call.1} parent=31 // pred_region
          %283 = dma.done [#allocation6], 48
        $region44: #{tpu_custom_call.1} parent=31 // pred_fallthru
          _
        %s284 = sand.u32 %s49, 1
        %s285 = scalar_lea.sflag [#allocation3], %s284
        %s286 = sand.u32 %s49, 1
        %s287 = smul.addr %s286, 16
        %s288 = scalar_lea.vmem [#allocation2], %s287
        %p289 = pneg %p62
        %p290 = pneg %p59
        %p291 = pneg %p83
        %p292 = pneg %p80
        %p293 = pneg %p104
        %p294 = pneg %p101
        %p295 = pneg %p132
        %p296 = pneg %p129
        %s297 = sand.u32 %s119, 1
        %s298 = scalar_lea.sflag [#allocation4], %s297
        %s299 = sand.u32 %s119, 1
        %s300 = smul.addr %s299, 16
        %s301 = scalar_lea.vmem [#allocation8], %s300
        %p302 = pneg %p160
        %p303 = pneg %p157
        %s304 = sand.u32 %s27, 1
        %s305 = scalar_lea.sflag [#allocation10], %s304
        %s306 = sand.u32 %s147, 1
        %s307 = smul.addr %s306, 16
        %s308 = scalar_lea.vmem [#allocation9], %s307
        %p309 = pneg %p188
        %p310 = pneg %p185
        %s311 = sand.u32 %s27, 1
        %s312 = scalar_lea.sflag [#allocation10], %s311
        %s313 = sand.u32 %s175, 1
        %s314 = smul.addr %s313, 16
        %s315 = scalar_lea.vmem [#allocation11], %s314
        %s316 = smul.u32 2, %s32
        %s317 = smul.u32 2, %s32
        %s318 = smul.u32 2, %s32
        %s319 = smul.u32 2, %s32
        %v320 = vld [vmem:[%s268] sm:$0xff]
        %v321 = vld [vmem:[%s268 + $0x8] sm:$0xff]
        %v322 = vld [vmem:[#allocation5] sm:$0xff]
        %v323 = vld [vmem:[#allocation5 + $0x8] sm:$0xff]
        %v324 = vld [vmem:[#allocation5 + $0x10] sm:$0xff]
        %v325 = vld [vmem:[#allocation5 + $0x18] sm:$0xff]
        %v326 = vld [vmem:[#allocation5 + $0x20] sm:$0xff]
        %v327 = vld [vmem:[#allocation5 + $0x28] sm:$0xff]
        %v328 = vld [vmem:[#allocation5 + $0x30] sm:$0xff]
        %v329 = vld [vmem:[#allocation5 + $0x38] sm:$0xff]
        %v330 = vld [vmem:[#allocation5 + $0x40] sm:$0xff]
        %v331 = vld [vmem:[#allocation5 + $0x48] sm:$0xff]
        %v332 = vld [vmem:[#allocation5 + $0x50] sm:$0xff]
        %v333 = vld [vmem:[#allocation5 + $0x58] sm:$0xff]
        %v334 = vld [vmem:[#allocation5 + $0x60] sm:$0xff]
        %v335 = vld [vmem:[#allocation5 + $0x68] sm:$0xff]
        %v336 = vld [vmem:[#allocation5 + $0x70] sm:$0xff]
        %v337 = vld [vmem:[#allocation5 + $0x78] sm:$0xff]
        %v338 = vld [vmem:[#allocation5 + $0x80] sm:$0xff]
        %v339 = vld [vmem:[#allocation5 + $0x88] sm:$0xff]
        %v340 = vld [vmem:[#allocation5 + $0x90] sm:$0xff]
        %v341 = vld [vmem:[#allocation5 + $0x98] sm:$0xff]
        %v342 = vld [vmem:[#allocation5 + $0xa0] sm:$0xff]
        %v343 = vld [vmem:[#allocation5 + $0xa8] sm:$0xff]
        %v344 = vld [vmem:[#allocation5 + $0xb0] sm:$0xff]
        %v345 = vld [vmem:[#allocation5 + $0xb8] sm:$0xff]
        %v346 = vld [vmem:[#allocation5 + $0xc0] sm:$0xff]
        %v347 = vld [vmem:[#allocation5 + $0xc8] sm:$0xff]
        %v348 = vld [vmem:[#allocation5 + $0xd0] sm:$0xff]
        %v349 = vld [vmem:[#allocation5 + $0xd8] sm:$0xff]
        %v350 = vld [vmem:[#allocation5 + $0xe0] sm:$0xff]
        %v351 = vld [vmem:[#allocation5 + $0xe8] sm:$0xff]
        %v352 = vld [vmem:[#allocation5 + $0xf0] sm:$0xff]
        %v353 = vld [vmem:[#allocation5 + $0xf8] sm:$0xff]
        %v354 = vld [vmem:[#allocation5 + $0x100] sm:$0xff]
        %v355 = vld [vmem:[#allocation5 + $0x108] sm:$0xff]
        %v356 = vld [vmem:[#allocation5 + $0x110] sm:$0xff]
        %v357 = vld [vmem:[#allocation5 + $0x118] sm:$0xff]
        %v358 = vld [vmem:[#allocation5 + $0x120] sm:$0xff]
        %v359 = vld [vmem:[#allocation5 + $0x128] sm:$0xff]
        %v360 = vld [vmem:[#allocation5 + $0x130] sm:$0xff]
        %v361 = vld [vmem:[#allocation5 + $0x138] sm:$0xff]
        %v362 = vld [vmem:[#allocation5 + $0x140] sm:$0xff]
        %v363 = vld [vmem:[#allocation5 + $0x148] sm:$0xff]
        %v364 = vld [vmem:[#allocation5 + $0x150] sm:$0xff]
        %v365 = vld [vmem:[#allocation5 + $0x158] sm:$0xff]
        %v366 = vld [vmem:[#allocation5 + $0x160] sm:$0xff]
        %v367 = vld [vmem:[#allocation5 + $0x168] sm:$0xff]
        %v368 = vld [vmem:[#allocation5 + $0x170] sm:$0xff]
        %v369 = vld [vmem:[#allocation5 + $0x178] sm:$0xff]
        %v370 = vld [vmem:[#allocation7] sm:$0x7]
        %v372 = vperm.slane %v370, 0
        %v373 = vperm.slane %v370, 1
        %v374 = vperm.slane %v370, 2
        %378 = vmatpush.msra.mxu0 %v367
        %379 = vmatpush.msra.mxu0 %v364
        %380 = vmatpush.msra.mxu0 %v361
        %381 = vmatpush.msra.mxu0 %v358
        %382 = vmatpush.msra.mxu0 %v355
        %383 = vmatpush.msra.mxu0 %v352
        %384 = vmatpush.msra.mxu0 %v349
        %385 = vmatpush.msra.mxu0 %v346
        %386 = vmatpush.msra.mxu0 %v343
        %387 = vmatpush.msra.mxu0 %v340
        %388 = vmatpush.msra.mxu0 %v337
        %389 = vmatpush.msra.mxu0 %v334
        %390 = vmatpush.msra.mxu0 %v331
        %391 = vmatpush.msra.mxu0 %v328
        %392 = vmatpush.msra.mxu0 %v325
        %393 = vmatpush.msra.mxu0 %v322
        %394 = vmatmul.f32.gmra.mxu0 %v320
        %v395 = vpop.f32.mrf.mxu0
        %v396 = vadd.f32 %v372, %v395
        %397 = vmatmul.f32.gmra.mxu0 %v321
        %v398 = vpop.f32.mrf.mxu0
        %v399 = vadd.f32 %v372, %v398
        %400 = vdwg.mxu0
        %401 = vmatpush.msra.mxu0 %v368
        %402 = vmatpush.msra.mxu0 %v365
        %403 = vmatpush.msra.mxu0 %v362
        %404 = vmatpush.msra.mxu0 %v359
        %405 = vmatpush.msra.mxu0 %v356
        %406 = vmatpush.msra.mxu0 %v353
        %407 = vmatpush.msra.mxu0 %v350
        %408 = vmatpush.msra.mxu0 %v347
        %409 = vmatpush.msra.mxu0 %v344
        %410 = vmatpush.msra.mxu0 %v341
        %411 = vmatpush.msra.mxu0 %v338
        %412 = vmatpush.msra.mxu0 %v335
        %413 = vmatpush.msra.mxu0 %v332
        %414 = vmatpush.msra.mxu0 %v329
        %415 = vmatpush.msra.mxu0 %v326
        %416 = vmatpush.msra.mxu0 %v323
        %417 = vmatmul.f32.gmra.mxu0 %v320
        %v418 = vpop.f32.mrf.mxu0
        %v419 = vadd.f32 %v373, %v418
        %420 = vmatmul.f32.gmra.mxu0 %v321
        %v421 = vpop.f32.mrf.mxu0
        %v422 = vadd.f32 %v373, %v421
        %423 = vdwg.mxu0
        %424 = vmatpush.msra.mxu0 %v369
        %425 = vmatpush.msra.mxu0 %v366
        %426 = vmatpush.msra.mxu0 %v363
        %427 = vmatpush.msra.mxu0 %v360
        %428 = vmatpush.msra.mxu0 %v357
        %429 = vmatpush.msra.mxu0 %v354
        %430 = vmatpush.msra.mxu0 %v351
        %431 = vmatpush.msra.mxu0 %v348
        %432 = vmatpush.msra.mxu0 %v345
        %433 = vmatpush.msra.mxu0 %v342
        %434 = vmatpush.msra.mxu0 %v339
        %435 = vmatpush.msra.mxu0 %v336
        %436 = vmatpush.msra.mxu0 %v333
        %437 = vmatpush.msra.mxu0 %v330
        %438 = vmatpush.msra.mxu0 %v327
        %439 = vmatpush.msra.mxu0 %v324
        %440 = vmatmul.f32.gmra.mxu0 %v320
        %v441 = vpop.f32.mrf.mxu0
        %v442 = vadd.f32 %v374, %v441
        %443 = vmatmul.f32.gmra.mxu0 %v321
        %v444 = vpop.f32.mrf.mxu0
        %v445 = vadd.f32 %v374, %v444
        %446 = vdwg.mxu0
        %447 = vst [vmem:[%s301] sm:$0xff] %v396
        %448 = vst [vmem:[%s301 + $0x8] sm:$0xff] %v399
        %449 = vst [vmem:[%s308] sm:$0xff] %v419
        %450 = vst [vmem:[%s308 + $0x8] sm:$0xff] %v422
        %451 = vst [vmem:[%s315] sm:$0xff] %v442
        %452 = vst [vmem:[%s315 + $0x8] sm:$0xff] %v445
        %s453 = sand.u32 %s119, 1
        %s454 = scalar_lea.sflag [#allocation4], %s453
        %s455 = sand.u32 %s119, 1
        %s456 = smul.addr %s455, 16
        %s457 = scalar_lea.vmem [#allocation8], %s456
        %s458 = sand.u32 %s27, 1
        %s459 = scalar_lea.sflag [#allocation10], %s458
        %s460 = sand.u32 %s147, 1
        %s461 = smul.addr %s460, 16
        %s462 = scalar_lea.vmem [#allocation9], %s461
        %s463 = sand.u32 %s27, 1
        %s464 = scalar_lea.sflag [#allocation10], %s463
        %s465 = sand.u32 %s175, 1
        %s466 = smul.addr %s465, 16
        %s467 = scalar_lea.vmem [#allocation11], %s466
        // Predicated region
        $region45: #{tpu_custom_call.1} parent=31 // pred_check
          %p468 = pneg %p129
        $region46: #{tpu_custom_call.1} parent=31 // pred_check_branch
          %470 = sbr.rel (%p468) target = $region48
        $region47: #{tpu_custom_call.1} parent=31 // pred_region
          %s471 = smul.u32 2, %s32
          %473 = vsyncadd %s454, 0
          %s474 = smul.addr %s31, 2
          %s475 = sadd.s32 %s471, %s474
          %s476 = smul.addr %s475, 8
          %s477 = scalar_lea.hbm %s3, %s476
          %s478 = sshll.u32 %s457, 4
          %s479 = int_to_ptr.vmem [resolvable:$true] %s478
          %s480 = sshll.u32 %s477, 4
          %s481 = int_to_ptr.hbm [resolvable:$true] %s480
          %486 = dma.vmem_to_hbm [thread:$0]  %s479, 256, %s481, %s454, 128, 128, 8
        $region48: #{tpu_custom_call.1} parent=31 // pred_fallthru
          _
        // Predicated region
        $region49: #{tpu_custom_call.1} parent=31 // pred_check
          %p487 = pneg %p157
        $region50: #{tpu_custom_call.1} parent=31 // pred_check_branch
          %489 = sbr.rel (%p487) target = $region52
        $region51: #{tpu_custom_call.1} parent=31 // pred_region
          %s490 = smul.u32 2, %s32
          %492 = vsyncadd %s459, 0
          %s493 = smul.addr %s31, 2
          %s494 = sadd.s32 %s490, %s493
          %s495 = smul.addr %s494, 8
          %s496 = scalar_lea.hbm %s4, %s495
          %s497 = sshll.u32 %s462, 4
          %s498 = int_to_ptr.vmem [resolvable:$true] %s497
          %s499 = sshll.u32 %s496, 4
          %s500 = int_to_ptr.hbm [resolvable:$true] %s499
          %505 = dma.vmem_to_hbm [thread:$0]  %s498, 256, %s500, %s459, 128, 128, 8
        $region52: #{tpu_custom_call.1} parent=31 // pred_fallthru
          _
        // Predicated region
        $region53: #{tpu_custom_call.1} parent=31 // pred_check
          %p506 = pneg %p185
        $region54: #{tpu_custom_call.1} parent=31 // pred_check_branch
          %508 = sbr.rel (%p506) target = $region56
        $region55: #{tpu_custom_call.1} parent=31 // pred_region
          %s509 = smul.u32 2, %s32
          %511 = vsyncadd %s464, 0
          %s512 = smul.addr %s31, 2
          %s513 = sadd.s32 %s509, %s512
          %s514 = smul.addr %s513, 8
          %s515 = scalar_lea.hbm %s5, %s514
          %s516 = sshll.u32 %s467, 4
          %s517 = int_to_ptr.vmem [resolvable:$true] %s516
          %s518 = sshll.u32 %s515, 4
          %s519 = int_to_ptr.hbm [resolvable:$true] %s518
          %524 = dma.vmem_to_hbm [thread:$0]  %s517, 256, %s519, %s464, 128, 128, 8
        $region56: #{tpu_custom_call.1} parent=31 // pred_fallthru
          _
      $region32: #{tpu_custom_call.1} parent=5 // pred_fallthru
        _
      %p525 = scmp.le.s32.totalorder 2, %s22
      // Predicated region
      $region57: #{tpu_custom_call.1} parent=5 // pred_check
        %p526 = pneg %p525
      $region58: #{tpu_custom_call.1} parent=5 // pred_check_branch
        %528 = sbr.rel (%p526) target = $region60
      $region59: #{tpu_custom_call.1} parent=5 // pred_region
        %s529 = ssub.s32 %s22, 2
        // Predicated region
        $region61: #{tpu_custom_call.1} parent=59 // pred_check
          %p530 = pneg %p135
        $region62: #{tpu_custom_call.1} parent=59 // pred_check_branch
          %532 = sbr.rel (%p530) target = $region64
        $region63: #{tpu_custom_call.1} parent=59 // pred_region
          %s533 = sand.u32 %s120, 1
          %s534 = scalar_lea.sflag [#allocation4], %s533
          %s535 = sand.u32 %s120, 1
          %s536 = smul.addr %s535, 16
          %s537 = scalar_lea.vmem [#allocation8], %s536
          %539 = dma.done %s534, 256
        $region64: #{tpu_custom_call.1} parent=59 // pred_fallthru
          _
        // Predicated region
        $region65: #{tpu_custom_call.1} parent=59 // pred_check
          %p540 = pneg %p163
        $region66: #{tpu_custom_call.1} parent=59 // pred_check_branch
          %542 = sbr.rel (%p540) target = $region68
        $region67: #{tpu_custom_call.1} parent=59 // pred_region
          %s543 = sand.u32 %s28, 1
          %s544 = scalar_lea.sflag [#allocation10], %s543
          %s545 = sand.u32 %s148, 1
          %s546 = smul.addr %s545, 16
          %s547 = scalar_lea.vmem [#allocation9], %s546
          %549 = dma.done %s544, 256
        $region68: #{tpu_custom_call.1} parent=59 // pred_fallthru
          _
        // Predicated region
        $region69: #{tpu_custom_call.1} parent=59 // pred_check
          %p550 = pneg %p191
        $region70: #{tpu_custom_call.1} parent=59 // pred_check_branch
          %552 = sbr.rel (%p550) target = $region72
        $region71: #{tpu_custom_call.1} parent=59 // pred_region
          %s553 = sand.u32 %s28, 1
          %s554 = scalar_lea.sflag [#allocation10], %s553
          %s555 = sand.u32 %s176, 1
          %s556 = smul.addr %s555, 16
          %s557 = scalar_lea.vmem [#allocation11], %s556
          %559 = dma.done %s554, 256
        $region72: #{tpu_custom_call.1} parent=59 // pred_fallthru
          _
      $region60: #{tpu_custom_call.1} parent=5 // pred_fallthru
        _
    $region6: #{tpu_custom_call.1} parent=1 // loop_footer
      %s26 = sadd.s32 1, %s22
    $region7: #{tpu_custom_call.1} parent=1 // loop_footer_branch
      %21 = sbr.rel target = $region3
    $region8: #{tpu_custom_call.1} parent=1 // loop_exit
      _
    %560 = vsyncpa [#allocation3], 1
    %s561 = scalar_lea.sflag [#allocation3], 1
    %562 = vsyncpa %s561, 1
    %563 = vsyncpa [#allocation6], 1
    %564 = vsyncpa [#allocation4], 1
    %s565 = scalar_lea.sflag [#allocation4], 1
    %566 = vsyncpa %s565, 1
    %567 = vsyncpa [#allocation10], 1
    %s568 = scalar_lea.sflag [#allocation10], 1
    %569 = vsyncpa %s568, 1

</llo_original>
